<compile_context>
chip_gen: v7x
topology: tpu7x:2x2x1
jax: 0.10.0
libtpu: 0.0.40
codegen_flags: <defaults>
</compile_context>

<pallas_src>
import functools

import jax
import jax.numpy as jnp
from jax.experimental import pallas as pl
from jax.experimental.pallas import tpu as pltpu


def _round_up(x: int, m: int) -> int:
    return (x + m - 1) // m * m


def socialdec_encoder_kernel(x_ref, w1_ref, b1_ref, w2_ref, b2_ref, z_ref):
    # x_ref:  (bm, D)   bf16  one batch-tile of inputs
    # w1_ref: (D, H)    bf16  encoder Linear weight (pre-transposed, resident)
    # b1_ref: (1, H)    f32
    # w2_ref: (H, Zp)   bf16  _enc_mu Linear weight (pre-transposed, lane-padded)
    # b2_ref: (1, Zp)   f32
    # z_ref:  (bm, Zp)  f32   lane-dense (padded) output slab
    h = jnp.dot(x_ref[...], w1_ref[...], preferred_element_type=jnp.float32)
    h = jnp.maximum(h + b1_ref[...], 0.0)                 # bias + ReLU in f32
    z = jnp.dot(h.astype(w2_ref.dtype), w2_ref[...],      # downcast only for MXU
                preferred_element_type=jnp.float32)
    z_ref[...] = (z + b2_ref[...]).astype(z_ref.dtype)


@functools.partial(jax.jit, static_argnames=("bm",))
def socialdec_encoder(x, w1, b1, w2, b2, *, bm=256):
    """x:[B,D] f32, w1:[D,H], b1:[H]|[1,H], w2:[H,Z], b2:[Z]|[1,Z] -> z:[B,Z] f32."""
    B, D = x.shape
    H = w1.shape[1]
    Z = w2.shape[1]

    # bf16 matmul operands (MXU native); biases stay f32.
    x_bf = x.astype(jnp.bfloat16)
    w1_bf = w1.astype(jnp.bfloat16)
    w2_bf = w2.astype(jnp.bfloat16)
    b1_f = b1.astype(jnp.float32).reshape(1, H)
    b2_f = b2.astype(jnp.float32).reshape(1, Z)

    # Lane-dense output: pad the z dimension to a multiple of 128 lanes so the
    # second matmul uses full MXU columns and stores are unmasked full vregs.
    Zp = _round_up(Z, 128)
    if Zp != Z:
        w2_bf = jnp.pad(w2_bf, ((0, 0), (0, Zp - Z)))
        b2_f = jnp.pad(b2_f, ((0, 0), (0, Zp - Z)))

    # Batch tile: large MXU-friendly M, multiple of 16 (bf16 sublane packing),
    # clamped so a tiny batch runs as a single grid step.
    bm_eff = min(_round_up(bm, 16), _round_up(B, 16))
    grid = (pl.cdiv(B, bm_eff),)

    # Advisory cost so XLA schedules surrounding HLO around this mem-bound call.
    flops = 2 * B * D * H + 2 * B * H * Zp
    bytes_accessed = (
        B * D * 2            # x (bf16)
        + D * H * 2          # W1 (bf16)
        + H * Zp * 2         # W2 (bf16, padded)
        + H * 4 + Zp * 4     # biases (f32)
        + B * Zp * 4         # output (f32, padded)
    )
    cost = pl.CostEstimate(flops=flops, transcendentals=0,
                           bytes_accessed=bytes_accessed)

    z_padded = pl.pallas_call(
        socialdec_encoder_kernel,
        out_shape=jax.ShapeDtypeStruct((B, Zp), jnp.float32),
        grid_spec=pltpu.PrefetchScalarGridSpec(
            num_scalar_prefetch=0,
            grid=grid,
            in_specs=[
                pl.BlockSpec((bm_eff, D), lambda i: (i, 0)),   # x : tiled over batch
                pl.BlockSpec((D, H), lambda i: (0, 0)),        # W1: resident
                pl.BlockSpec((1, H), lambda i: (0, 0)),        # b1
                pl.BlockSpec((H, Zp), lambda i: (0, 0)),       # W2: resident
                pl.BlockSpec((1, Zp), lambda i: (0, 0)),       # b2
            ],
            out_specs=pl.BlockSpec((bm_eff, Zp), lambda i: (i, 0)),
        ),
        compiler_params=pltpu.CompilerParams(
            dimension_semantics=("parallel",),   # batch tiles split across TCs (v7x)
            vmem_limit_bytes=64 * 1024 * 1024,   # explicit cap; fine on v5e/v6e/v7x
        ),
        cost_estimate=cost,
    )(x_bf, w1_bf, b1_f, w2_bf, b2_f)

    return z_padded[:, :Z].astype(x.dtype)


def init_linear_params(key, in_features, out_features, dtype=jnp.float32):
    """Deterministic init mimicking torch.nn.Linear defaults."""
    kw, kb = jax.random.split(key)
    bound = 1.0 / (in_features ** 0.5)
    # Stored as [in, out] (transposed vs. PyTorch's [out, in]) for the kernel layout.
    w = jax.random.uniform(kw, (in_features, out_features), dtype, -bound, bound)
    b = jax.random.uniform(kb, (1, out_features), dtype, -bound, bound)
    return w, b


if __name__ == "__main__":
    # Small shapes consistent with SocialDEC_encoder(input_dim, z_dim, encodeLayer=[H])
    batch = 16
    input_dim = 256       # input_dim
    hidden = 128          # encodeLayer = [hidden]
    z_dim = 32            # z_dim
    n_clusters = 10

    key = jax.random.PRNGKey(0)
    kx, k1, k2, kmu = jax.random.split(key, 4)

    x = jax.random.normal(kx, (batch, input_dim), jnp.float32)
    w1, b1 = init_linear_params(k1, input_dim, hidden)   # encoder Linear
    w2, b2 = init_linear_params(k2, hidden, z_dim)       # _enc_mu Linear
    # Cluster centers `mu` exist in the module but are unused in forward().
    mu = jax.random.normal(kmu, (n_clusters, z_dim), jnp.float32)  # noqa: F841

    z = socialdec_encoder(x, w1, b1, w2, b2)
    z = jax.block_until_ready(z)
    assert z.shape == (batch, z_dim)

    # Reference 1: same bf16-matmul / f32-accumulate recipe as the kernel (tight check).
    xb, w1b, w2b = (a.astype(jnp.bfloat16) for a in (x, w1, w2))
    h_bf = jnp.maximum(
        jnp.dot(xb, w1b, preferred_element_type=jnp.float32) + b1, 0.0)
    z_bf_ref = jnp.dot(h_bf.astype(jnp.bfloat16), w2b,
                       preferred_element_type=jnp.float32) + b2
    assert jnp.allclose(z, z_bf_ref, atol=2e-3, rtol=2e-3)

    # Reference 2: pure f32 forward semantics (loose check covering the bf16 cast).
    h_f32 = jnp.maximum(x @ w1 + b1, 0.0)
    z_f32_ref = h_f32 @ w2 + b2
    assert jnp.allclose(z, z_f32_ref, atol=5e-2, rtol=5e-2)

    print("KERNEL_OK")
</pallas_src>

<mosaic_0001>
module attributes {stable_mosaic.version = 11 : i64} {
  func.func @socialdec_encoder_kernel(%arg0: i32, %arg1: memref<16x256xbf16, #tpu.memory_space<vmem>>, %arg2: memref<256x128xbf16, #tpu.memory_space<vmem>>, %arg3: memref<1x128xf32, #tpu.memory_space<vmem>>, %arg4: memref<128x128xbf16, #tpu.memory_space<vmem>>, %arg5: memref<1x128xf32, #tpu.memory_space<vmem>>, %arg6: memref<16x128xf32, #tpu.memory_space<vmem>>) attributes {dimension_semantics = [#tpu.dimension_semantics<parallel>], iteration_bounds = array<i64: 1>, scalar_prefetch = 0 : i64, scratch_operands = 0 : i64, tpu.core_type = #tpu.core_type<tc>, window_params = [{transform_indices = @transform_0, window_bounds = array<i64: 16, 256>}, {pipeline_mode = #tpu.pipeline_mode<synchronous>, transform_indices = @transform_1, window_bounds = array<i64: 256, 128>}, {pipeline_mode = #tpu.pipeline_mode<synchronous>, transform_indices = @transform_2, window_bounds = array<i64: 1, 128>}, {pipeline_mode = #tpu.pipeline_mode<synchronous>, transform_indices = @transform_3, window_bounds = array<i64: 128, 128>}, {pipeline_mode = #tpu.pipeline_mode<synchronous>, transform_indices = @transform_4, window_bounds = array<i64: 1, 128>}, {transform_indices = @transform_5, window_bounds = array<i64: 16, 128>}]} {
    %c0 = arith.constant 0 : index
    %c0_0 = arith.constant 0 : index
    %0 = vector.load %arg1[%c0, %c0_0] : memref<16x256xbf16, #tpu.memory_space<vmem>>, vector<16x256xbf16>
    %c0_1 = arith.constant 0 : index
    %c0_2 = arith.constant 0 : index
    %1 = vector.load %arg2[%c0_1, %c0_2] : memref<256x128xbf16, #tpu.memory_space<vmem>>, vector<256x128xbf16>
    %cst = arith.constant dense<0.000000e+00> : vector<16x128xf32>
    %2 = tpu.matmul %0, %1, %cst {dimension_numbers = #tpu.dot_dimension_numbers<[1], [0], [0], [1], [0, 0, 1, 1], [], []>} : vector<16x256xbf16>, vector<256x128xbf16>, vector<16x128xf32> -> vector<16x128xf32>
    %c0_3 = arith.constant 0 : index
    %c0_4 = arith.constant 0 : index
    %3 = vector.load %arg3[%c0_3, %c0_4] : memref<1x128xf32, #tpu.memory_space<vmem>>, vector<1x128xf32>
    %4 = vector.broadcast %3 : vector<1x128xf32> to vector<16x128xf32>
    %5 = arith.addf %2, %4 : vector<16x128xf32>
    %cst_5 = arith.constant 0.000000e+00 : f32
    %6 = vector.broadcast %cst_5 : f32 to vector<16x128xf32>
    %7 = arith.maximumf %5, %6 : vector<16x128xf32>
    %8 = arith.truncf %7 : vector<16x128xf32> to vector<16x128xbf16>
    %c0_6 = arith.constant 0 : index
    %c0_7 = arith.constant 0 : index
    %9 = vector.load %arg4[%c0_6, %c0_7] : memref<128x128xbf16, #tpu.memory_space<vmem>>, vector<128x128xbf16>
    %cst_8 = arith.constant dense<0.000000e+00> : vector<16x128xf32>
    %10 = tpu.matmul %8, %9, %cst_8 {dimension_numbers = #tpu.dot_dimension_numbers<[1], [0], [0], [1], [0, 0, 1, 1], [], []>} : vector<16x128xbf16>, vector<128x128xbf16>, vector<16x128xf32> -> vector<16x128xf32>
    %c0_9 = arith.constant 0 : index
    %c0_10 = arith.constant 0 : index
    %11 = vector.load %arg5[%c0_9, %c0_10] : memref<1x128xf32, #tpu.memory_space<vmem>>, vector<1x128xf32>
    %12 = vector.broadcast %11 : vector<1x128xf32> to vector<16x128xf32>
    %13 = arith.addf %10, %12 : vector<16x128xf32>
    %c0_11 = arith.constant 0 : index
    %c0_12 = arith.constant 0 : index
    %14 = vector.load %arg6[%c0_11, %c0_12] : memref<16x128xf32, #tpu.memory_space<vmem>>, vector<16x128xf32>
    tpu.vector_store %arg6[%c0_11, %c0_12], %13 {strides = array<i32>} : memref<16x128xf32, #tpu.memory_space<vmem>>, vector<16x128xf32>,
    return
  }
  func.func @transform_0(%arg0: i32) -> (i32, i32) {
    %c0_i32 = arith.constant 0 : i32
    %c0_i32_0 = arith.constant 0 : i32
    return %arg0, %c0_i32 : i32, i32
  }
  func.func @transform_1(%arg0: i32) -> (i32, i32) {
    %c0_i32 = arith.constant 0 : i32
    %c0_i32_0 = arith.constant 0 : i32
    %c0_i32_1 = arith.constant 0 : i32
    return %c0_i32, %c0_i32_0 : i32, i32
  }
  func.func @transform_2(%arg0: i32) -> (i32, i32) {
    %c0_i32 = arith.constant 0 : i32
    %c0_i32_0 = arith.constant 0 : i32
    %c0_i32_1 = arith.constant 0 : i32
    return %c0_i32, %c0_i32_0 : i32, i32
  }
  func.func @transform_3(%arg0: i32) -> (i32, i32) {
    %c0_i32 = arith.constant 0 : i32
    %c0_i32_0 = arith.constant 0 : i32
    %c0_i32_1 = arith.constant 0 : i32
    return %c0_i32, %c0_i32_0 : i32, i32
  }
  func.func @transform_4(%arg0: i32) -> (i32, i32) {
    %c0_i32 = arith.constant 0 : i32
    %c0_i32_0 = arith.constant 0 : i32
    %c0_i32_1 = arith.constant 0 : i32
    return %c0_i32, %c0_i32_0 : i32, i32
  }
  func.func @transform_5(%arg0: i32) -> (i32, i32) {
    %c0_i32 = arith.constant 0 : i32
    %c0_i32_0 = arith.constant 0 : i32
    return %arg0, %c0_i32 : i32, i32
  }
}

</mosaic_0001>

<llo_original>
// kernel: socialdec_encoder.1
$region0: #{socialdec_encoder.1}
  #allocation0 [shape = 'u32[]', space=smem, size = 0x4, offset = 0x4, fixed_abs, tag = 'smem constant byte address 0x4 - core index']
  #allocation1 [shape = 'u32[144,128]{1,0:T(1,128)}', space=vmem, size = 0x12000, scoped, tag = 'internal scratch']
  %s0 = inlined_call_operand.hbm [shape: bf16[16,256], index: 0, kind: input, shape index: {}]
  %s1 = inlined_call_operand.hbm [shape: bf16[256,128], index: 1, kind: input, shape index: {}]
  %s2 = inlined_call_operand.hbm [shape: f32[1,128], index: 2, kind: input, shape index: {}]
  %s3 = inlined_call_operand.hbm [shape: bf16[128,128], index: 3, kind: input, shape index: {}]
  %s4 = inlined_call_operand.hbm [shape: f32[1,128], index: 4, kind: input, shape index: {}]
  %s5 = inlined_call_operand.hbm [shape: f32[16,128], index: 5, kind: output, shape index: {}]
  %s6 = sld [smem:[#allocation0]]
  $region50: #{socialdec_encoder.1} parent=0
    _
  %s8 = ssub.s32 1, %s6
  %s9 = scalar_select 0, %s8, %s6
  $region1: #{socialdec_encoder.1} parent=0
    #allocation2 [shape = 'u8[8192]{0}', space=vmem, size = 0x2000, scoped, tag = 'input window, operand 0, single buffered']
    #allocation3 [shape = 's32[1]{0}', space=sflag, size = 0x4, scoped, tag = 'scoped memory for socialdec_encoder.1']
    #allocation4 [shape = 's32[1]{0}', space=sflag, size = 0x4, scoped, tag = 'scoped memory for socialdec_encoder.1']
    #allocation5 [shape = 'u8[65536]{0}', space=vmem, size = 0x10000, scoped, tag = 'input window, operand 1, single buffered']
    #allocation6 [shape = 's32[1]{0}', space=sflag, size = 0x4, scoped, tag = 'scoped memory for socialdec_encoder.1']
    #allocation7 [shape = 'u8[512]{0}', space=vmem, size = 0x400, scoped, tag = 'input window, operand 2, single buffered']
    #allocation8 [shape = 'u8[32768]{0}', space=vmem, size = 0x8000, scoped, tag = 'input window, operand 3, single buffered']
    #allocation9 [shape = 's32[1]{0}', space=sflag, size = 0x4, scoped, tag = 'scoped memory for socialdec_encoder.1']
    #allocation10 [shape = 'u8[512]{0}', space=vmem, size = 0x400, scoped, tag = 'input window, operand 4, single buffered']
    #allocation11 [shape = 'u8[8192]{0}', space=vmem, size = 0x2000, scoped, tag = 'output window, operand 0, single buffered']
    %10 = vsyncpa [#allocation3], 0
    %11 = vsyncpa [#allocation6], 0
    %12 = vsyncpa [#allocation9], 0
    %13 = vsyncpa [#allocation4], 0
    // Predicated region
    $region2: #{socialdec_encoder.1} parent=1 // pred_check
      _
    $region3: #{socialdec_encoder.1} parent=1 // pred_check_branch
      %15 = sbr.rel (0) target = $region5
    $region4: #{socialdec_encoder.1} parent=1 // pred_region
      %s17 = ssub.s32 256, 256
      %18 = vsyncadd [#allocation3], %s17
      %s19 = sshll.u32 [#allocation2], 4
      %s20 = int_to_ptr.vmem [resolvable:$true] %s19
      %25 = dma.hbm_to_vmem [thread:$0]  %s0, 256, %s20, [#allocation3], 128, 128, 8
    $region5: #{socialdec_encoder.1} parent=1 // pred_fallthru
      _
    // Predicated region
    $region6: #{socialdec_encoder.1} parent=1 // pred_check
      _
    $region7: #{socialdec_encoder.1} parent=1 // pred_check_branch
      %27 = sbr.rel (0) target = $region9
    $region8: #{socialdec_encoder.1} parent=1 // pred_region
      %s29 = ssub.s32 2048, 2048
      %30 = vsyncadd [#allocation6], %s29
      %s31 = sshll.u32 [#allocation5], 4
      %s32 = int_to_ptr.vmem [resolvable:$true] %s31
      %37 = dma.hbm_to_vmem [thread:$0]  %s1, 2048, %s32, [#allocation6], 64, 64, 4
    $region9: #{socialdec_encoder.1} parent=1 // pred_fallthru
      _
    // Predicated region
    $region10: #{socialdec_encoder.1} parent=1 // pred_check
      _
    $region11: #{socialdec_encoder.1} parent=1 // pred_check_branch
      %39 = sbr.rel (0) target = $region13
    $region12: #{socialdec_encoder.1} parent=1 // pred_region
      %s41 = ssub.s32 16, 16
      %42 = vsyncadd [#allocation6], %s41
      %s44 = sshll.u32 [#allocation7], 4
      %s45 = int_to_ptr.vmem [resolvable:$true] %s44
      %47 = dma.hbm_to_vmem [thread:$0]  %s2, 16, %s45, [#allocation6]
    $region13: #{socialdec_encoder.1} parent=1 // pred_fallthru
      _
    // Predicated region
    $region14: #{socialdec_encoder.1} parent=1 // pred_check
      _
    $region15: #{socialdec_encoder.1} parent=1 // pred_check_branch
      %49 = sbr.rel (0) target = $region17
    $region16: #{socialdec_encoder.1} parent=1 // pred_region
      %s51 = ssub.s32 1024, 1024
      %52 = vsyncadd [#allocation9], %s51
      %s53 = sshll.u32 [#allocation8], 4
      %s54 = int_to_ptr.vmem [resolvable:$true] %s53
      %59 = dma.hbm_to_vmem [thread:$0]  %s3, 1024, %s54, [#allocation9], 64, 64, 4
    $region17: #{socialdec_encoder.1} parent=1 // pred_fallthru
      _
    // Predicated region
    $region18: #{socialdec_encoder.1} parent=1 // pred_check
      _
    $region19: #{socialdec_encoder.1} parent=1 // pred_check_branch
      %61 = sbr.rel (0) target = $region21
    $region20: #{socialdec_encoder.1} parent=1 // pred_region
      %s63 = ssub.s32 16, 16
      %64 = vsyncadd [#allocation9], %s63
      %s66 = sshll.u32 [#allocation10], 4
      %s67 = int_to_ptr.vmem [resolvable:$true] %s66
      %69 = dma.hbm_to_vmem [thread:$0]  %s4, 16, %s67, [#allocation9]
    $region21: #{socialdec_encoder.1} parent=1 // pred_fallthru
      _
    // Predicated region
    $region22: #{socialdec_encoder.1} parent=1 // pred_check
      _
    $region23: #{socialdec_encoder.1} parent=1 // pred_check_branch
      %71 = sbr.rel (0) target = $region25
    $region24: #{socialdec_encoder.1} parent=1 // pred_region
      %72 = dma.done [#allocation3], 256
    $region25: #{socialdec_encoder.1} parent=1 // pred_fallthru
      _
    // Predicated region
    $region26: #{socialdec_encoder.1} parent=1 // pred_check
      _
    $region27: #{socialdec_encoder.1} parent=1 // pred_check_branch
      %74 = sbr.rel (0) target = $region29
    $region28: #{socialdec_encoder.1} parent=1 // pred_region
      %75 = dma.done [#allocation6], 2048
    $region29: #{socialdec_encoder.1} parent=1 // pred_fallthru
      _
    // Predicated region
    $region30: #{socialdec_encoder.1} parent=1 // pred_check
      _
    $region31: #{socialdec_encoder.1} parent=1 // pred_check_branch
      %77 = sbr.rel (0) target = $region33
    $region32: #{socialdec_encoder.1} parent=1 // pred_region
      %78 = dma.done [#allocation6], 16
    $region33: #{socialdec_encoder.1} parent=1 // pred_fallthru
      _
    // Predicated region
    $region34: #{socialdec_encoder.1} parent=1 // pred_check
      _
    $region35: #{socialdec_encoder.1} parent=1 // pred_check_branch
      %80 = sbr.rel (0) target = $region37
    $region36: #{socialdec_encoder.1} parent=1 // pred_region
      %81 = dma.done [#allocation9], 1024
    $region37: #{socialdec_encoder.1} parent=1 // pred_fallthru
      _
    // Predicated region
    $region38: #{socialdec_encoder.1} parent=1 // pred_check
      _
    $region39: #{socialdec_encoder.1} parent=1 // pred_check_branch
      %83 = sbr.rel (0) target = $region41
    $region40: #{socialdec_encoder.1} parent=1 // pred_region
      %84 = dma.done [#allocation9], 16
    $region41: #{socialdec_encoder.1} parent=1 // pred_fallthru
      _
    %v86 = vld [vmem:[#allocation2] sm:$0xff]
    %v87 = vld [vmem:[#allocation2 + $0x8] sm:$0xff]
    %v88 = vld [vmem:[#allocation5] sm:$0xf]
    %v89 = vld [vmem:[#allocation5 + $0x4] sm:$0xf]
    %v90 = vld [vmem:[#allocation5 + $0x8] sm:$0xf]
    %v91 = vld [vmem:[#allocation5 + $0xc] sm:$0xf]
    %v92 = vld [vmem:[#allocation5 + $0x10] sm:$0xf]
    %v93 = vld [vmem:[#allocation5 + $0x14] sm:$0xf]
    %v94 = vld [vmem:[#allocation5 + $0x18] sm:$0xf]
    %v95 = vld [vmem:[#allocation5 + $0x1c] sm:$0xf]
    %v96 = vld [vmem:[#allocation5 + $0x20] sm:$0xf]
    %v97 = vld [vmem:[#allocation5 + $0x24] sm:$0xf]
    %v98 = vld [vmem:[#allocation5 + $0x28] sm:$0xf]
    %v99 = vld [vmem:[#allocation5 + $0x2c] sm:$0xf]
    %v100 = vld [vmem:[#allocation5 + $0x30] sm:$0xf]
    %v101 = vld [vmem:[#allocation5 + $0x34] sm:$0xf]
    %v102 = vld [vmem:[#allocation5 + $0x38] sm:$0xf]
    %v103 = vld [vmem:[#allocation5 + $0x3c] sm:$0xf]
    %v104 = vld [vmem:[#allocation5 + $0x40] sm:$0xf]
    %v105 = vld [vmem:[#allocation5 + $0x44] sm:$0xf]
    %v106 = vld [vmem:[#allocation5 + $0x48] sm:$0xf]
    %v107 = vld [vmem:[#allocation5 + $0x4c] sm:$0xf]
    %v108 = vld [vmem:[#allocation5 + $0x50] sm:$0xf]
    %v109 = vld [vmem:[#allocation5 + $0x54] sm:$0xf]
    %v110 = vld [vmem:[#allocation5 + $0x58] sm:$0xf]
    %v111 = vld [vmem:[#allocation5 + $0x5c] sm:$0xf]
    %v112 = vld [vmem:[#allocation5 + $0x60] sm:$0xf]
    %v113 = vld [vmem:[#allocation5 + $0x64] sm:$0xf]
    %v114 = vld [vmem:[#allocation5 + $0x68] sm:$0xf]
    %v115 = vld [vmem:[#allocation5 + $0x6c] sm:$0xf]
    %v116 = vld [vmem:[#allocation5 + $0x70] sm:$0xf]
    %v117 = vld [vmem:[#allocation5 + $0x74] sm:$0xf]
    %v118 = vld [vmem:[#allocation5 + $0x78] sm:$0xf]
    %v119 = vld [vmem:[#allocation5 + $0x7c] sm:$0xf]
    %v120 = vld [vmem:[#allocation7] sm:$0x1]
    %v122 = vlaneseq
    %v123 = vshrl.u32 %v122, 7
    %v124 = vsub.s32 0, %v123
    %v125 = vrot.slane %v120, %v124
    %v129 = vunpack.c.l.b16 %v86
    %v130 = vunpack.c.h.b16 %v86
    %v131 = vunpack.c.l.b16 %v87
    %v132 = vunpack.c.h.b16 %v87
    %v133 = vpack.c.b16 %v131, %v129
    %v134 = vpack.c.b16 %v132, %v130
    %v169 = vunpack.c.l.b16 %v88
    %v170 = vunpack.c.l.b16 %v89
    %v171 = vunpack.c.l.b16 %v90
    %v172 = vunpack.c.l.b16 %v91
    %v173 = vunpack.c.l.b16 %v92
    %v174 = vunpack.c.l.b16 %v93
    %v175 = vunpack.c.l.b16 %v94
    %v176 = vunpack.c.l.b16 %v95
    %v177 = vunpack.c.l.b16 %v96
    %v178 = vunpack.c.l.b16 %v97
    %v179 = vunpack.c.l.b16 %v98
    %v180 = vunpack.c.l.b16 %v99
    %v181 = vunpack.c.l.b16 %v100
    %v182 = vunpack.c.l.b16 %v101
    %v183 = vunpack.c.l.b16 %v102
    %v184 = vunpack.c.l.b16 %v103
    %v185 = vunpack.c.l.b16 %v104
    %v186 = vunpack.c.l.b16 %v105
    %v187 = vunpack.c.l.b16 %v106
    %v188 = vunpack.c.l.b16 %v107
    %v189 = vunpack.c.l.b16 %v108
    %v190 = vunpack.c.l.b16 %v109
    %v191 = vunpack.c.l.b16 %v110
    %v192 = vunpack.c.l.b16 %v111
    %v193 = vunpack.c.l.b16 %v112
    %v194 = vunpack.c.l.b16 %v113
    %v195 = vunpack.c.l.b16 %v114
    %v196 = vunpack.c.l.b16 %v115
    %v197 = vunpack.c.l.b16 %v116
    %v198 = vunpack.c.l.b16 %v117
    %v199 = vunpack.c.l.b16 %v118
    %v200 = vunpack.c.l.b16 %v119
    %v201 = vpack.c.b16 %v170, %v169
    %v202 = vpack.c.b16 %v172, %v171
    %v203 = vpack.c.b16 %v174, %v173
    %v204 = vpack.c.b16 %v176, %v175
    %v205 = vpack.c.b16 %v178, %v177
    %v206 = vpack.c.b16 %v180, %v179
    %v207 = vpack.c.b16 %v182, %v181
    %v208 = vpack.c.b16 %v184, %v183
    %v209 = vpack.c.b16 %v186, %v185
    %v210 = vpack.c.b16 %v188, %v187
    %v211 = vpack.c.b16 %v190, %v189
    %v212 = vpack.c.b16 %v192, %v191
    %v213 = vpack.c.b16 %v194, %v193
    %v214 = vpack.c.b16 %v196, %v195
    %v215 = vpack.c.b16 %v198, %v197
    %v216 = vpack.c.b16 %v200, %v199
    %233 = vmatprep.subr.bf16.mxu0 0
    %234 = vmatpush1.bf16.msra.mxu0 %v201
    %235 = vmatprep.subr.bf16.mxu0 0
    %236 = vmatpush1.bf16.msra.mxu0 %v202
    %237 = vmatprep.subr.bf16.mxu0 0
    %238 = vmatpush1.bf16.msra.mxu0 %v203
    %239 = vmatprep.subr.bf16.mxu0 0
    %240 = vmatpush1.bf16.msra.mxu0 %v204
    %241 = vmatprep.subr.bf16.mxu0 0
    %242 = vmatpush1.bf16.msra.mxu0 %v205
    %243 = vmatprep.subr.bf16.mxu0 0
    %244 = vmatpush1.bf16.msra.mxu0 %v206
    %245 = vmatprep.subr.bf16.mxu0 0
    %246 = vmatpush1.bf16.msra.mxu0 %v207
    %247 = vmatprep.subr.bf16.mxu0 0
    %248 = vmatpush1.bf16.msra.mxu0 %v208
    %249 = vmatprep.subr.bf16.mxu0 0
    %250 = vmatpush1.bf16.msra.mxu0 %v209
    %251 = vmatprep.subr.bf16.mxu0 0
    %252 = vmatpush1.bf16.msra.mxu0 %v210
    %253 = vmatprep.subr.bf16.mxu0 0
    %254 = vmatpush1.bf16.msra.mxu0 %v211
    %255 = vmatprep.subr.bf16.mxu0 0
    %256 = vmatpush1.bf16.msra.mxu0 %v212
    %257 = vmatprep.subr.bf16.mxu0 0
    %258 = vmatpush1.bf16.msra.mxu0 %v213
    %259 = vmatprep.subr.bf16.mxu0 0
    %260 = vmatpush1.bf16.msra.mxu0 %v214
    %261 = vmatprep.subr.bf16.mxu0 0
    %262 = vmatpush1.bf16.msra.mxu0 %v215
    %263 = vmatprep.subr.bf16.mxu0 0
    %264 = vmatpush1.bf16.msra.mxu0 %v216
    %265 = vmatprep.mubr.bf16.mxu0 %v134
    %266 = vmatmul.mubr.bf16.gmra.mrb[0].mxu0 %v133
    %v267 = vpop.f32.mrb[0].mxu0
    %v268 = vadd.f32 %v125, %v267
    %v269 = vpop.f32.mrb[0].mxu0
    %v270 = vpop.f32.mrb[0].mxu0
    %v271 = vadd.f32 %v125, %v270
    %v272 = vpop.f32.mrb[0].mxu0
    %273 = vdwg.mxu0
    %v274 = vmax.f32 %v268, 0.0
    %v275 = vmax.f32 %v271, 0.0
    %v276 = vpack.c.bf16 %v275, %v274
    %v277 = vld [vmem:[#allocation8] sm:$0xf]
    %v278 = vld [vmem:[#allocation8 + $0x4] sm:$0xf]
    %v279 = vld [vmem:[#allocation8 + $0x8] sm:$0xf]
    %v280 = vld [vmem:[#allocation8 + $0xc] sm:$0xf]
    %v281 = vld [vmem:[#allocation8 + $0x10] sm:$0xf]
    %v282 = vld [vmem:[#allocation8 + $0x14] sm:$0xf]
    %v283 = vld [vmem:[#allocation8 + $0x18] sm:$0xf]
    %v284 = vld [vmem:[#allocation8 + $0x1c] sm:$0xf]
    %v285 = vld [vmem:[#allocation8 + $0x20] sm:$0xf]
    %v286 = vld [vmem:[#allocation8 + $0x24] sm:$0xf]
    %v287 = vld [vmem:[#allocation8 + $0x28] sm:$0xf]
    %v288 = vld [vmem:[#allocation8 + $0x2c] sm:$0xf]
    %v289 = vld [vmem:[#allocation8 + $0x30] sm:$0xf]
    %v290 = vld [vmem:[#allocation8 + $0x34] sm:$0xf]
    %v291 = vld [vmem:[#allocation8 + $0x38] sm:$0xf]
    %v292 = vld [vmem:[#allocation8 + $0x3c] sm:$0xf]
    %v293 = vld [vmem:[#allocation10] sm:$0x1]
    %v295 = vlaneseq
    %v296 = vshrl.u32 %v295, 7
    %v297 = vsub.s32 0, %v296
    %v298 = vrot.slane %v293, %v297
    %v316 = vunpack.c.l.b16 %v277
    %v317 = vunpack.c.l.b16 %v278
    %v318 = vunpack.c.l.b16 %v279
    %v319 = vunpack.c.l.b16 %v280
    %v320 = vunpack.c.l.b16 %v281
    %v321 = vunpack.c.l.b16 %v282
    %v322 = vunpack.c.l.b16 %v283
    %v323 = vunpack.c.l.b16 %v284
    %v324 = vunpack.c.l.b16 %v285
    %v325 = vunpack.c.l.b16 %v286
    %v326 = vunpack.c.l.b16 %v287
    %v327 = vunpack.c.l.b16 %v288
    %v328 = vunpack.c.l.b16 %v289
    %v329 = vunpack.c.l.b16 %v290
    %v330 = vunpack.c.l.b16 %v291
    %v331 = vunpack.c.l.b16 %v292
    %v332 = vpack.c.b16 %v317, %v316
    %v333 = vpack.c.b16 %v319, %v318
    %v334 = vpack.c.b16 %v321, %v320
    %v335 = vpack.c.b16 %v323, %v322
    %v336 = vpack.c.b16 %v325, %v324
    %v337 = vpack.c.b16 %v327, %v326
    %v338 = vpack.c.b16 %v329, %v328
    %v339 = vpack.c.b16 %v331, %v330
    %348 = vmatprep.subr.bf16.mxu0 0
    %349 = vmatpush1.bf16.msra.mxu0 %v332
    %350 = vmatprep.subr.bf16.mxu0 0
    %351 = vmatpush1.bf16.msra.mxu0 %v333
    %352 = vmatprep.subr.bf16.mxu0 0
    %353 = vmatpush1.bf16.msra.mxu0 %v334
    %354 = vmatprep.subr.bf16.mxu0 0
    %355 = vmatpush1.bf16.msra.mxu0 %v335
    %356 = vmatprep.subr.bf16.mxu0 0
    %357 = vmatpush1.bf16.msra.mxu0 %v336
    %358 = vmatprep.subr.bf16.mxu0 0
    %359 = vmatpush1.bf16.msra.mxu0 %v337
    %360 = vmatprep.subr.bf16.mxu0 0
    %361 = vmatpush1.bf16.msra.mxu0 %v338
    %362 = vmatprep.subr.bf16.mxu0 0
    %363 = vmatpush1.bf16.msra.mxu0 %v339
    %364 = vmatprep.subr.bf16.mxu0 0
    %365 = vmatpush1.bf16.msra.mxu0 0
    %366 = vmatprep.subr.bf16.mxu0 0
    %367 = vmatpush1.bf16.msra.mxu0 0
    %368 = vmatprep.subr.bf16.mxu0 0
    %369 = vmatpush1.bf16.msra.mxu0 0
    %370 = vmatprep.subr.bf16.mxu0 0
    %371 = vmatpush1.bf16.msra.mxu0 0
    %372 = vmatprep.subr.bf16.mxu0 0
    %373 = vmatpush1.bf16.msra.mxu0 0
    %374 = vmatprep.subr.bf16.mxu0 0
    %375 = vmatpush1.bf16.msra.mxu0 0
    %376 = vmatprep.subr.bf16.mxu0 0
    %377 = vmatpush1.bf16.msra.mxu0 0
    %378 = vmatprep.subr.bf16.mxu0 0
    %379 = vmatpush1.bf16.msra.mxu0 0
    %380 = vmatprep.mubr.bf16.mxu0 0
    %381 = vmatmul.mubr.bf16.gmra.mrb[0].mxu0 %v276
    %v382 = vpop.f32.mrb[0].mxu0
    %v383 = vadd.f32 %v298, %v382
    %v384 = vpop.f32.mrb[0].mxu0
    %v385 = vpop.f32.mrb[0].mxu0
    %v386 = vadd.f32 %v298, %v385
    %v387 = vpop.f32.mrb[0].mxu0
    %388 = vdwg.mxu0
    %389 = vst [vmem:[#allocation11] sm:$0xff] %v383
    %390 = vst [vmem:[#allocation11 + $0x8] sm:$0xff] %v386
    // Predicated region
    $region42: #{socialdec_encoder.1} parent=1 // pred_check
      _
    $region43: #{socialdec_encoder.1} parent=1 // pred_check_branch
      %392 = sbr.rel (0) target = $region45
    $region44: #{socialdec_encoder.1} parent=1 // pred_region
      %s394 = ssub.s32 256, 256
      %395 = vsyncadd [#allocation4], %s394
      %s396 = sshll.u32 [#allocation11], 4
      %s397 = int_to_ptr.vmem [resolvable:$true] %s396
      %402 = dma.vmem_to_hbm [thread:$0]  %s397, 256, %s5, [#allocation4], 128, 128, 8
    $region45: #{socialdec_encoder.1} parent=1 // pred_fallthru
      _
    // Predicated region
    $region46: #{socialdec_encoder.1} parent=1 // pred_check
      _
    $region47: #{socialdec_encoder.1} parent=1 // pred_check_branch
      %404 = sbr.rel (0) target = $region49
    $region48: #{socialdec_encoder.1} parent=1 // pred_region
      %405 = dma.done [#allocation4], 256
    $region49: #{socialdec_encoder.1} parent=1 // pred_fallthru
      _
    %406 = vsyncpa [#allocation3], 1
    %407 = vsyncpa [#allocation6], 1
    %408 = vsyncpa [#allocation9], 1
    %409 = vsyncpa [#allocation4], 1

</llo_original>
